<compile_context>
chip_gen: v7x
topology: tpu7x:2x2x1
jax: 0.10.0
libtpu: 0.0.40
codegen_flags: <defaults>
</compile_context>

<pallas_src>
import jax
import jax.numpy as jnp
from jax import lax
from jax.experimental import pallas as pl
from jax.experimental.pallas import tpu as pltpu

NEG_SLOPE = 0.2  # LeakyReLU(0.2)


# ----------------------------------------------------------------------------
# Pallas kernel: fused  (x @ W1^T) -> LeakyReLU -> (@ W2^T)
# ----------------------------------------------------------------------------
def _classifier_kernel(x_ref, w1_ref, w2_ref, o_ref):
    # x_ref : (tm, C)   rows = batch*vec-dim, lanes = latent channels (lane-dense)
    # w1_ref: (C, H)    W1^T, resident in VMEM
    # w2_ref: (H, O)    W2^T
    h = jnp.dot(x_ref[...], w1_ref[...], preferred_element_type=jnp.float32)
    h = jnp.where(h >= 0, h, NEG_SLOPE * h)          # LeakyReLU(0.2)
    o_ref[...] = jnp.dot(h, w2_ref[...], preferred_element_type=jnp.float32)


def classifier_forward(x, params, *, tm=512):
    """x: [B, C, 3] vector-neuron features (PyTorch layout). Returns [B, 1, 3]."""
    # TODO(synk): nn.Dropout(0.2) is implemented as inference-mode identity;
    # training-mode masking would need pltpu.prng_seed / prng_random_bits.
    w1 = params["w1"].astype(jnp.float32)            # (H, C)   VNLinear 1 (no bias)
    w2 = params["w2"].astype(jnp.float32)            # (O, H)   VNLinear 2 (no bias)
    B, C, D = x.shape
    H, O = w1.shape[0], w2.shape[0]

    # channel-last rows: [B*D, C]  (C = latent on lanes -> lane-dense matmul input)
    xm = jnp.transpose(x, (0, 2, 1)).reshape(B * D, C).astype(jnp.float32)
    w1m = jnp.transpose(w1)                          # (C, H)
    w2m = jnp.transpose(w2)                          # (H, O)
    M = B * D

    if M <= tm or M % tm != 0:
        # Tiny / irregular case: whole problem in VMEM, single invocation, no grid.
        out = pl.pallas_call(
            _classifier_kernel,
            out_shape=jax.ShapeDtypeStruct((M, O), jnp.float32),
        )(xm, w1m, w2m)
    else:
        # Large-batch path: tile rows, keep weights resident, parallel row axis
        # (>=2 steps lets v7x megacore shard across its two TensorCores).
        out = pl.pallas_call(
            _classifier_kernel,
            out_shape=jax.ShapeDtypeStruct((M, O), jnp.float32),
            grid=(M // tm,),
            in_specs=[
                pl.BlockSpec((tm, C), lambda i: (i, 0)),
                pl.BlockSpec((C, H), lambda i: (0, 0)),
                pl.BlockSpec((H, O), lambda i: (0, 0)),
            ],
            out_specs=pl.BlockSpec((tm, O), lambda i: (i, 0)),
            compiler_params=pltpu.CompilerParams(
                dimension_semantics=("parallel",)),
        )(xm, w1m, w2m)

    return jnp.transpose(out.reshape(B, D, O), (0, 2, 1))    # -> [B, O(=1), 3]


# ----------------------------------------------------------------------------
# Deterministic parameter init (VNLinear has bias=False; the module's _init
# loop never matches VNLinear children, so any deterministic init is fine).
# ----------------------------------------------------------------------------
def make_params(key, latent, inter, out=1):
    k1, k2 = jax.random.split(key)
    return {
        "w1": (2.0 / latent) ** 0.5
        * jax.random.normal(k1, (inter, latent), jnp.float32),
        "w2": (2.0 / inter) ** 0.5
        * jax.random.normal(k2, (out, inter), jnp.float32),
    }


# ----------------------------------------------------------------------------
# Pure-JAX reference (for correctness sanity check)
# ----------------------------------------------------------------------------
def reference_forward(x, params):
    xt = jnp.swapaxes(x, 1, -1)                                   # [B, 3, C]
    h = jnp.einsum("bdc,hc->bdh", xt, params["w1"],
                   precision=lax.Precision.HIGHEST)               # VNLinear 1
    h = jnp.where(h >= 0, h, NEG_SLOPE * h)                       # LeakyReLU
    z = jnp.einsum("bdh,oh->bdo", h, params["w2"],
                   precision=lax.Precision.HIGHEST)               # VNLinear 2
    return jnp.swapaxes(z, 1, -1)                                 # [B, 1, 3]


if __name__ == "__main__":
    key = jax.random.PRNGKey(0)
    kx, kp, kx2 = jax.random.split(key, 3)

    B, LATENT, INTER, VDIM = 2, 1024, 64, 3
    params = make_params(kp, LATENT, INTER)

    # small default case (single fused no-grid kernel)
    x = jax.random.normal(kx, (B, LATENT, VDIM), jnp.float32)      # [B, C, 3]
    out = jax.block_until_ready(classifier_forward(x, params))
    assert out.shape == (B, 1, VDIM), out.shape
    ref = jax.block_until_ready(reference_forward(x, params))
    assert jnp.allclose(out, ref, rtol=1e-3, atol=1e-4), (
        float(jnp.max(jnp.abs(out - ref))))

    # larger batch exercises the row-tiled parallel-grid path (M = 1536, tm = 512)
    B2 = 512
    x2 = jax.random.normal(kx2, (B2, LATENT, VDIM), jnp.float32)
    out2 = jax.block_until_ready(classifier_forward(x2, params))
    ref2 = jax.block_until_ready(reference_forward(x2, params))
    assert out2.shape == (B2, 1, VDIM), out2.shape
    assert jnp.allclose(out2, ref2, rtol=1e-3, atol=1e-4), (
        float(jnp.max(jnp.abs(out2 - ref2))))

    print("KERNEL_OK")
</pallas_src>

<mosaic_0001>
module attributes {stable_mosaic.version = 11 : i64} {
  func.func @_classifier_kernel(%arg0: memref<6x1024xf32, #tpu.memory_space<vmem>>, %arg1: memref<1024x64xf32, #tpu.memory_space<vmem>>, %arg2: memref<64x1xf32, #tpu.memory_space<vmem>>, %arg3: memref<6x1xf32, #tpu.memory_space<vmem>>) attributes {dimension_semantics = [], scalar_prefetch = 0 : i64, scratch_operands = 0 : i64, tpu.core_type = #tpu.core_type<tc>} {
    %c0 = arith.constant 0 : index
    %c0_0 = arith.constant 0 : index
    %0 = vector.load %arg0[%c0, %c0_0] : memref<6x1024xf32, #tpu.memory_space<vmem>>, vector<6x1024xf32>
    %c0_1 = arith.constant 0 : index
    %c0_2 = arith.constant 0 : index
    %1 = vector.load %arg1[%c0_1, %c0_2] : memref<1024x64xf32, #tpu.memory_space<vmem>>, vector<1024x64xf32>
    %cst = arith.constant dense<0.000000e+00> : vector<6x64xf32>
    %2 = tpu.matmul %0, %1, %cst {dimension_numbers = #tpu.dot_dimension_numbers<[1], [0], [0], [1], [0, 0, 1, 1], [], []>} : vector<6x1024xf32>, vector<1024x64xf32>, vector<6x64xf32> -> vector<6x64xf32>
    %cst_3 = arith.constant 0.000000e+00 : f32
    %3 = vector.broadcast %cst_3 : f32 to vector<6x64xf32>
    %4 = arith.cmpf oge, %2, %3 : vector<6x64xf32>
    %cst_4 = arith.constant 2.000000e-01 : f32
    %5 = vector.broadcast %cst_4 : f32 to vector<6x64xf32>
    %6 = arith.mulf %5, %2 : vector<6x64xf32>
    %7 = arith.select %4, %2, %6 : vector<6x64xi1>, vector<6x64xf32>
    %c0_5 = arith.constant 0 : index
    %c0_6 = arith.constant 0 : index
    %8 = vector.load %arg2[%c0_5, %c0_6] : memref<64x1xf32, #tpu.memory_space<vmem>>, vector<64x1xf32>
    %cst_7 = arith.constant dense<0.000000e+00> : vector<6x1xf32>
    %9 = tpu.matmul %7, %8, %cst_7 {dimension_numbers = #tpu.dot_dimension_numbers<[1], [0], [0], [1], [0, 0, 1, 1], [], []>} : vector<6x64xf32>, vector<64x1xf32>, vector<6x1xf32> -> vector<6x1xf32>
    %c0_8 = arith.constant 0 : index
    %c0_9 = arith.constant 0 : index
    %10 = vector.load %arg3[%c0_8, %c0_9] : memref<6x1xf32, #tpu.memory_space<vmem>>, vector<6x1xf32>
    tpu.vector_store %arg3[%c0_8, %c0_9], %9 {strides = array<i32>} : memref<6x1xf32, #tpu.memory_space<vmem>>, vector<6x1xf32>,
    return
  }
}

</mosaic_0001>

<llo_original>
// kernel: tpu_custom_call.1
$region0: #{tpu_custom_call.1}
  #allocation0 [shape = 'u32[]', space=smem, size = 0x4, offset = 0x4, fixed_abs, tag = 'smem constant byte address 0x4 - core index']
  #allocation1 [shape = 'u32[144,128]{1,0:T(1,128)}', space=vmem, size = 0x12000, scoped, tag = 'internal scratch']
  %s0 = inlined_call_operand.vmem [shape: f32[6,1024], index: 0, kind: input, shape index: {}]
  %s1 = inlined_call_operand.vmem [shape: f32[1024,64], index: 1, kind: input, shape index: {}]
  %s2 = inlined_call_operand.vmem [shape: f32[64,1], index: 2, kind: input, shape index: {}]
  %s3 = inlined_call_operand.vmem [shape: f32[6,1], index: 3, kind: output, shape index: {}]
  %s4 = sld [smem:[#allocation0]]
  $region22: #{tpu_custom_call.1} parent=0
    _
  %s6 = ssub.s32 1, %s4
  %s7 = scalar_select 0, %s6, %s4
  // Predicated region
  $region2: #{tpu_custom_call.1} parent=0 // pred_check
    _
  $region3: #{tpu_custom_call.1} parent=0 // pred_check_branch
    %9 = sbr.rel (0) target = $region5
  $region4: #{tpu_custom_call.1} parent=0 // pred_region
    _
  $region5: #{tpu_custom_call.1} parent=0 // pred_fallthru
    _
  // Predicated region
  $region6: #{tpu_custom_call.1} parent=0 // pred_check
    _
  $region7: #{tpu_custom_call.1} parent=0 // pred_check_branch
    %11 = sbr.rel (0) target = $region9
  $region8: #{tpu_custom_call.1} parent=0 // pred_region
    _
  $region9: #{tpu_custom_call.1} parent=0 // pred_fallthru
    _
  // Predicated region
  $region10: #{tpu_custom_call.1} parent=0 // pred_check
    _
  $region11: #{tpu_custom_call.1} parent=0 // pred_check_branch
    %13 = sbr.rel (0) target = $region13
  $region12: #{tpu_custom_call.1} parent=0 // pred_region
    _
  $region13: #{tpu_custom_call.1} parent=0 // pred_fallthru
    _
  %v14 = vld [vmem:[%s0] sm:$0x3f]
  %v15 = vld [vmem:[%s0 + $0x8] sm:$0x3f]
  %v16 = vld [vmem:[%s0 + $0x10] sm:$0x3f]
  %v17 = vld [vmem:[%s0 + $0x18] sm:$0x3f]
  %v18 = vld [vmem:[%s0 + $0x20] sm:$0x3f]
  %v19 = vld [vmem:[%s0 + $0x28] sm:$0x3f]
  %v20 = vld [vmem:[%s0 + $0x30] sm:$0x3f]
  %v21 = vld [vmem:[%s0 + $0x38] sm:$0x3f]
  %v22 = vld [vmem:[%s1] sm:$0xff]
  %v23 = vld [vmem:[%s1 + $0x8] sm:$0xff]
  %v24 = vld [vmem:[%s1 + $0x10] sm:$0xff]
  %v25 = vld [vmem:[%s1 + $0x18] sm:$0xff]
  %v26 = vld [vmem:[%s1 + $0x20] sm:$0xff]
  %v27 = vld [vmem:[%s1 + $0x28] sm:$0xff]
  %v28 = vld [vmem:[%s1 + $0x30] sm:$0xff]
  %v29 = vld [vmem:[%s1 + $0x38] sm:$0xff]
  %v30 = vld [vmem:[%s1 + $0x40] sm:$0xff]
  %v31 = vld [vmem:[%s1 + $0x48] sm:$0xff]
  %v32 = vld [vmem:[%s1 + $0x50] sm:$0xff]
  %v33 = vld [vmem:[%s1 + $0x58] sm:$0xff]
  %v34 = vld [vmem:[%s1 + $0x60] sm:$0xff]
  %v35 = vld [vmem:[%s1 + $0x68] sm:$0xff]
  %v36 = vld [vmem:[%s1 + $0x70] sm:$0xff]
  %v37 = vld [vmem:[%s1 + $0x78] sm:$0xff]
  %v38 = vld [vmem:[%s1 + $0x80] sm:$0xff]
  %v39 = vld [vmem:[%s1 + $0x88] sm:$0xff]
  %v40 = vld [vmem:[%s1 + $0x90] sm:$0xff]
  %v41 = vld [vmem:[%s1 + $0x98] sm:$0xff]
  %v42 = vld [vmem:[%s1 + $0xa0] sm:$0xff]
  %v43 = vld [vmem:[%s1 + $0xa8] sm:$0xff]
  %v44 = vld [vmem:[%s1 + $0xb0] sm:$0xff]
  %v45 = vld [vmem:[%s1 + $0xb8] sm:$0xff]
  %v46 = vld [vmem:[%s1 + $0xc0] sm:$0xff]
  %v47 = vld [vmem:[%s1 + $0xc8] sm:$0xff]
  %v48 = vld [vmem:[%s1 + $0xd0] sm:$0xff]
  %v49 = vld [vmem:[%s1 + $0xd8] sm:$0xff]
  %v50 = vld [vmem:[%s1 + $0xe0] sm:$0xff]
  %v51 = vld [vmem:[%s1 + $0xe8] sm:$0xff]
  %v52 = vld [vmem:[%s1 + $0xf0] sm:$0xff]
  %v53 = vld [vmem:[%s1 + $0xf8] sm:$0xff]
  %v54 = vld [vmem:[%s1 + $0x100] sm:$0xff]
  %v55 = vld [vmem:[%s1 + $0x108] sm:$0xff]
  %v56 = vld [vmem:[%s1 + $0x110] sm:$0xff]
  %v57 = vld [vmem:[%s1 + $0x118] sm:$0xff]
  %v58 = vld [vmem:[%s1 + $0x120] sm:$0xff]
  %v59 = vld [vmem:[%s1 + $0x128] sm:$0xff]
  %v60 = vld [vmem:[%s1 + $0x130] sm:$0xff]
  %v61 = vld [vmem:[%s1 + $0x138] sm:$0xff]
  %v62 = vld [vmem:[%s1 + $0x140] sm:$0xff]
  %v63 = vld [vmem:[%s1 + $0x148] sm:$0xff]
  %v64 = vld [vmem:[%s1 + $0x150] sm:$0xff]
  %v65 = vld [vmem:[%s1 + $0x158] sm:$0xff]
  %v66 = vld [vmem:[%s1 + $0x160] sm:$0xff]
  %v67 = vld [vmem:[%s1 + $0x168] sm:$0xff]
  %v68 = vld [vmem:[%s1 + $0x170] sm:$0xff]
  %v69 = vld [vmem:[%s1 + $0x178] sm:$0xff]
  %v70 = vld [vmem:[%s1 + $0x180] sm:$0xff]
  %v71 = vld [vmem:[%s1 + $0x188] sm:$0xff]
  %v72 = vld [vmem:[%s1 + $0x190] sm:$0xff]
  %v73 = vld [vmem:[%s1 + $0x198] sm:$0xff]
  %v74 = vld [vmem:[%s1 + $0x1a0] sm:$0xff]
  %v75 = vld [vmem:[%s1 + $0x1a8] sm:$0xff]
  %v76 = vld [vmem:[%s1 + $0x1b0] sm:$0xff]
  %v77 = vld [vmem:[%s1 + $0x1b8] sm:$0xff]
  %v78 = vld [vmem:[%s1 + $0x1c0] sm:$0xff]
  %v79 = vld [vmem:[%s1 + $0x1c8] sm:$0xff]
  %v80 = vld [vmem:[%s1 + $0x1d0] sm:$0xff]
  %v81 = vld [vmem:[%s1 + $0x1d8] sm:$0xff]
  %v82 = vld [vmem:[%s1 + $0x1e0] sm:$0xff]
  %v83 = vld [vmem:[%s1 + $0x1e8] sm:$0xff]
  %v84 = vld [vmem:[%s1 + $0x1f0] sm:$0xff]
  %v85 = vld [vmem:[%s1 + $0x1f8] sm:$0xff]
  %v86 = vld [vmem:[%s1 + $0x200] sm:$0xff]
  %v87 = vld [vmem:[%s1 + $0x208] sm:$0xff]
  %v88 = vld [vmem:[%s1 + $0x210] sm:$0xff]
  %v89 = vld [vmem:[%s1 + $0x218] sm:$0xff]
  %v90 = vld [vmem:[%s1 + $0x220] sm:$0xff]
  %v91 = vld [vmem:[%s1 + $0x228] sm:$0xff]
  %v92 = vld [vmem:[%s1 + $0x230] sm:$0xff]
  %v93 = vld [vmem:[%s1 + $0x238] sm:$0xff]
  %v94 = vld [vmem:[%s1 + $0x240] sm:$0xff]
  %v95 = vld [vmem:[%s1 + $0x248] sm:$0xff]
  %v96 = vld [vmem:[%s1 + $0x250] sm:$0xff]
  %v97 = vld [vmem:[%s1 + $0x258] sm:$0xff]
  %v98 = vld [vmem:[%s1 + $0x260] sm:$0xff]
  %v99 = vld [vmem:[%s1 + $0x268] sm:$0xff]
  %v100 = vld [vmem:[%s1 + $0x270] sm:$0xff]
  %v101 = vld [vmem:[%s1 + $0x278] sm:$0xff]
  %v102 = vld [vmem:[%s1 + $0x280] sm:$0xff]
  %v103 = vld [vmem:[%s1 + $0x288] sm:$0xff]
  %v104 = vld [vmem:[%s1 + $0x290] sm:$0xff]
  %v105 = vld [vmem:[%s1 + $0x298] sm:$0xff]
  %v106 = vld [vmem:[%s1 + $0x2a0] sm:$0xff]
  %v107 = vld [vmem:[%s1 + $0x2a8] sm:$0xff]
  %v108 = vld [vmem:[%s1 + $0x2b0] sm:$0xff]
  %v109 = vld [vmem:[%s1 + $0x2b8] sm:$0xff]
  %v110 = vld [vmem:[%s1 + $0x2c0] sm:$0xff]
  %v111 = vld [vmem:[%s1 + $0x2c8] sm:$0xff]
  %v112 = vld [vmem:[%s1 + $0x2d0] sm:$0xff]
  %v113 = vld [vmem:[%s1 + $0x2d8] sm:$0xff]
  %v114 = vld [vmem:[%s1 + $0x2e0] sm:$0xff]
  %v115 = vld [vmem:[%s1 + $0x2e8] sm:$0xff]
  %v116 = vld [vmem:[%s1 + $0x2f0] sm:$0xff]
  %v117 = vld [vmem:[%s1 + $0x2f8] sm:$0xff]
  %v118 = vld [vmem:[%s1 + $0x300] sm:$0xff]
  %v119 = vld [vmem:[%s1 + $0x308] sm:$0xff]
  %v120 = vld [vmem:[%s1 + $0x310] sm:$0xff]
  %v121 = vld [vmem:[%s1 + $0x318] sm:$0xff]
  %v122 = vld [vmem:[%s1 + $0x320] sm:$0xff]
  %v123 = vld [vmem:[%s1 + $0x328] sm:$0xff]
  %v124 = vld [vmem:[%s1 + $0x330] sm:$0xff]
  %v125 = vld [vmem:[%s1 + $0x338] sm:$0xff]
  %v126 = vld [vmem:[%s1 + $0x340] sm:$0xff]
  %v127 = vld [vmem:[%s1 + $0x348] sm:$0xff]
  %v128 = vld [vmem:[%s1 + $0x350] sm:$0xff]
  %v129 = vld [vmem:[%s1 + $0x358] sm:$0xff]
  %v130 = vld [vmem:[%s1 + $0x360] sm:$0xff]
  %v131 = vld [vmem:[%s1 + $0x368] sm:$0xff]
  %v132 = vld [vmem:[%s1 + $0x370] sm:$0xff]
  %v133 = vld [vmem:[%s1 + $0x378] sm:$0xff]
  %v134 = vld [vmem:[%s1 + $0x380] sm:$0xff]
  %v135 = vld [vmem:[%s1 + $0x388] sm:$0xff]
  %v136 = vld [vmem:[%s1 + $0x390] sm:$0xff]
  %v137 = vld [vmem:[%s1 + $0x398] sm:$0xff]
  %v138 = vld [vmem:[%s1 + $0x3a0] sm:$0xff]
  %v139 = vld [vmem:[%s1 + $0x3a8] sm:$0xff]
  %v140 = vld [vmem:[%s1 + $0x3b0] sm:$0xff]
  %v141 = vld [vmem:[%s1 + $0x3b8] sm:$0xff]
  %v142 = vld [vmem:[%s1 + $0x3c0] sm:$0xff]
  %v143 = vld [vmem:[%s1 + $0x3c8] sm:$0xff]
  %v144 = vld [vmem:[%s1 + $0x3d0] sm:$0xff]
  %v145 = vld [vmem:[%s1 + $0x3d8] sm:$0xff]
  %v146 = vld [vmem:[%s1 + $0x3e0] sm:$0xff]
  %v147 = vld [vmem:[%s1 + $0x3e8] sm:$0xff]
  %v148 = vld [vmem:[%s1 + $0x3f0] sm:$0xff]
  %v149 = vld [vmem:[%s1 + $0x3f8] sm:$0xff]
  %150 = vmatprep.subr.mxu0 0.0
  %151 = vmatpush1.msra.mxu0 %v22
  %152 = vmatprep.subr.mxu0 0.0
  %153 = vmatpush1.msra.mxu0 %v23
  %154 = vmatprep.subr.mxu0 0.0
  %155 = vmatpush1.msra.mxu0 %v24
  %156 = vmatprep.subr.mxu0 0.0
  %157 = vmatpush1.msra.mxu0 %v25
  %158 = vmatprep.subr.mxu0 0.0
  %159 = vmatpush1.msra.mxu0 %v26
  %160 = vmatprep.subr.mxu0 0.0
  %161 = vmatpush1.msra.mxu0 %v27
  %162 = vmatprep.subr.mxu0 0.0
  %163 = vmatpush1.msra.mxu0 %v28
  %164 = vmatprep.subr.mxu0 0.0
  %165 = vmatpush1.msra.mxu0 %v29
  %166 = vmatprep.subr.mxu0 0.0
  %167 = vmatpush1.msra.mxu0 %v30
  %168 = vmatprep.subr.mxu0 0.0
  %169 = vmatpush1.msra.mxu0 %v31
  %170 = vmatprep.subr.mxu0 0.0
  %171 = vmatpush1.msra.mxu0 %v32
  %172 = vmatprep.subr.mxu0 0.0
  %173 = vmatpush1.msra.mxu0 %v33
  %174 = vmatprep.subr.mxu0 0.0
  %175 = vmatpush1.msra.mxu0 %v34
  %176 = vmatprep.subr.mxu0 0.0
  %177 = vmatpush1.msra.mxu0 %v35
  %178 = vmatprep.subr.mxu0 0.0
  %179 = vmatpush1.msra.mxu0 %v36
  %180 = vmatprep.subr.mxu0 0.0
  %181 = vmatpush1.msra.mxu0 %v37
  %182 = vmatprep.subr.mxu0 0.0
  %183 = vmatpush1.msra.mxu0 %v38
  %184 = vmatprep.subr.mxu0 0.0
  %185 = vmatpush1.msra.mxu0 %v39
  %186 = vmatprep.subr.mxu0 0.0
  %187 = vmatpush1.msra.mxu0 %v40
  %188 = vmatprep.subr.mxu0 0.0
  %189 = vmatpush1.msra.mxu0 %v41
  %190 = vmatprep.subr.mxu0 0.0
  %191 = vmatpush1.msra.mxu0 %v42
  %192 = vmatprep.subr.mxu0 0.0
  %193 = vmatpush1.msra.mxu0 %v43
  %194 = vmatprep.subr.mxu0 0.0
  %195 = vmatpush1.msra.mxu0 %v44
  %196 = vmatprep.subr.mxu0 0.0
  %197 = vmatpush1.msra.mxu0 %v45
  %198 = vmatprep.subr.mxu0 0.0
  %199 = vmatpush1.msra.mxu0 %v46
  %200 = vmatprep.subr.mxu0 0.0
  %201 = vmatpush1.msra.mxu0 %v47
  %202 = vmatprep.subr.mxu0 0.0
  %203 = vmatpush1.msra.mxu0 %v48
  %204 = vmatprep.subr.mxu0 0.0
  %205 = vmatpush1.msra.mxu0 %v49
  %206 = vmatprep.subr.mxu0 0.0
  %207 = vmatpush1.msra.mxu0 %v50
  %208 = vmatprep.subr.mxu0 0.0
  %209 = vmatpush1.msra.mxu0 %v51
  %210 = vmatprep.subr.mxu0 0.0
  %211 = vmatpush1.msra.mxu0 %v52
  %212 = vmatprep.subr.mxu0 0.0
  %213 = vmatpush1.msra.mxu0 %v53
  %214 = vmatprep.mubr.f32.mxu0 %v15
  %215 = vmatmul.mubr.f32.gmra.mrb[0].mxu0 %v14
  %v216 = vpop.f32.mrb[0].mxu0
  %v217 = vadd.f32 0.0, %v216
  %v218 = vpop.f32.mrb[0].mxu0
  %219 = vdwg.mxu0
  %220 = vmatprep.subr.mxu0 0.0
  %221 = vmatpush1.msra.mxu0 %v54
  %222 = vmatprep.subr.mxu0 0.0
  %223 = vmatpush1.msra.mxu0 %v55
  %224 = vmatprep.subr.mxu0 0.0
  %225 = vmatpush1.msra.mxu0 %v56
  %226 = vmatprep.subr.mxu0 0.0
  %227 = vmatpush1.msra.mxu0 %v57
  %228 = vmatprep.subr.mxu0 0.0
  %229 = vmatpush1.msra.mxu0 %v58
  %230 = vmatprep.subr.mxu0 0.0
  %231 = vmatpush1.msra.mxu0 %v59
  %232 = vmatprep.subr.mxu0 0.0
  %233 = vmatpush1.msra.mxu0 %v60
  %234 = vmatprep.subr.mxu0 0.0
  %235 = vmatpush1.msra.mxu0 %v61
  %236 = vmatprep.subr.mxu0 0.0
  %237 = vmatpush1.msra.mxu0 %v62
  %238 = vmatprep.subr.mxu0 0.0
  %239 = vmatpush1.msra.mxu0 %v63
  %240 = vmatprep.subr.mxu0 0.0
  %241 = vmatpush1.msra.mxu0 %v64
  %242 = vmatprep.subr.mxu0 0.0
  %243 = vmatpush1.msra.mxu0 %v65
  %244 = vmatprep.subr.mxu0 0.0
  %245 = vmatpush1.msra.mxu0 %v66
  %246 = vmatprep.subr.mxu0 0.0
  %247 = vmatpush1.msra.mxu0 %v67
  %248 = vmatprep.subr.mxu0 0.0
  %249 = vmatpush1.msra.mxu0 %v68
  %250 = vmatprep.subr.mxu0 0.0
  %251 = vmatpush1.msra.mxu0 %v69
  %252 = vmatprep.subr.mxu0 0.0
  %253 = vmatpush1.msra.mxu0 %v70
  %254 = vmatprep.subr.mxu0 0.0
  %255 = vmatpush1.msra.mxu0 %v71
  %256 = vmatprep.subr.mxu0 0.0
  %257 = vmatpush1.msra.mxu0 %v72
  %258 = vmatprep.subr.mxu0 0.0
  %259 = vmatpush1.msra.mxu0 %v73
  %260 = vmatprep.subr.mxu0 0.0
  %261 = vmatpush1.msra.mxu0 %v74
  %262 = vmatprep.subr.mxu0 0.0
  %263 = vmatpush1.msra.mxu0 %v75
  %264 = vmatprep.subr.mxu0 0.0
  %265 = vmatpush1.msra.mxu0 %v76
  %266 = vmatprep.subr.mxu0 0.0
  %267 = vmatpush1.msra.mxu0 %v77
  %268 = vmatprep.subr.mxu0 0.0
  %269 = vmatpush1.msra.mxu0 %v78
  %270 = vmatprep.subr.mxu0 0.0
  %271 = vmatpush1.msra.mxu0 %v79
  %272 = vmatprep.subr.mxu0 0.0
  %273 = vmatpush1.msra.mxu0 %v80
  %274 = vmatprep.subr.mxu0 0.0
  %275 = vmatpush1.msra.mxu0 %v81
  %276 = vmatprep.subr.mxu0 0.0
  %277 = vmatpush1.msra.mxu0 %v82
  %278 = vmatprep.subr.mxu0 0.0
  %279 = vmatpush1.msra.mxu0 %v83
  %280 = vmatprep.subr.mxu0 0.0
  %281 = vmatpush1.msra.mxu0 %v84
  %282 = vmatprep.subr.mxu0 0.0
  %283 = vmatpush1.msra.mxu0 %v85
  %284 = vmatprep.mubr.f32.mxu0 %v17
  %285 = vmatmul.mubr.f32.gmra.mrb[0].mxu0 %v16
  %v286 = vpop.f32.mrb[0].mxu0
  %v287 = vadd.f32 %v217, %v286
  %v288 = vpop.f32.mrb[0].mxu0
  %289 = vdwg.mxu0
  %290 = vmatprep.subr.mxu0 0.0
  %291 = vmatpush1.msra.mxu0 %v86
  %292 = vmatprep.subr.mxu0 0.0
  %293 = vmatpush1.msra.mxu0 %v87
  %294 = vmatprep.subr.mxu0 0.0
  %295 = vmatpush1.msra.mxu0 %v88
  %296 = vmatprep.subr.mxu0 0.0
  %297 = vmatpush1.msra.mxu0 %v89
  %298 = vmatprep.subr.mxu0 0.0
  %299 = vmatpush1.msra.mxu0 %v90
  %300 = vmatprep.subr.mxu0 0.0
  %301 = vmatpush1.msra.mxu0 %v91
  %302 = vmatprep.subr.mxu0 0.0
  %303 = vmatpush1.msra.mxu0 %v92
  %304 = vmatprep.subr.mxu0 0.0
  %305 = vmatpush1.msra.mxu0 %v93
  %306 = vmatprep.subr.mxu0 0.0
  %307 = vmatpush1.msra.mxu0 %v94
  %308 = vmatprep.subr.mxu0 0.0
  %309 = vmatpush1.msra.mxu0 %v95
  %310 = vmatprep.subr.mxu0 0.0
  %311 = vmatpush1.msra.mxu0 %v96
  %312 = vmatprep.subr.mxu0 0.0
  %313 = vmatpush1.msra.mxu0 %v97
  %314 = vmatprep.subr.mxu0 0.0
  %315 = vmatpush1.msra.mxu0 %v98
  %316 = vmatprep.subr.mxu0 0.0
  %317 = vmatpush1.msra.mxu0 %v99
  %318 = vmatprep.subr.mxu0 0.0
  %319 = vmatpush1.msra.mxu0 %v100
  %320 = vmatprep.subr.mxu0 0.0
  %321 = vmatpush1.msra.mxu0 %v101
  %322 = vmatprep.subr.mxu0 0.0
  %323 = vmatpush1.msra.mxu0 %v102
  %324 = vmatprep.subr.mxu0 0.0
  %325 = vmatpush1.msra.mxu0 %v103
  %326 = vmatprep.subr.mxu0 0.0
  %327 = vmatpush1.msra.mxu0 %v104
  %328 = vmatprep.subr.mxu0 0.0
  %329 = vmatpush1.msra.mxu0 %v105
  %330 = vmatprep.subr.mxu0 0.0
  %331 = vmatpush1.msra.mxu0 %v106
  %332 = vmatprep.subr.mxu0 0.0
  %333 = vmatpush1.msra.mxu0 %v107
  %334 = vmatprep.subr.mxu0 0.0
  %335 = vmatpush1.msra.mxu0 %v108
  %336 = vmatprep.subr.mxu0 0.0
  %337 = vmatpush1.msra.mxu0 %v109
  %338 = vmatprep.subr.mxu0 0.0
  %339 = vmatpush1.msra.mxu0 %v110
  %340 = vmatprep.subr.mxu0 0.0
  %341 = vmatpush1.msra.mxu0 %v111
  %342 = vmatprep.subr.mxu0 0.0
  %343 = vmatpush1.msra.mxu0 %v112
  %344 = vmatprep.subr.mxu0 0.0
  %345 = vmatpush1.msra.mxu0 %v113
  %346 = vmatprep.subr.mxu0 0.0
  %347 = vmatpush1.msra.mxu0 %v114
  %348 = vmatprep.subr.mxu0 0.0
  %349 = vmatpush1.msra.mxu0 %v115
  %350 = vmatprep.subr.mxu0 0.0
  %351 = vmatpush1.msra.mxu0 %v116
  %352 = vmatprep.subr.mxu0 0.0
  %353 = vmatpush1.msra.mxu0 %v117
  %354 = vmatprep.mubr.f32.mxu0 %v19
  %355 = vmatmul.mubr.f32.gmra.mrb[0].mxu0 %v18
  %v356 = vpop.f32.mrb[0].mxu0
  %v357 = vadd.f32 %v287, %v356
  %v358 = vpop.f32.mrb[0].mxu0
  %359 = vdwg.mxu0
  %360 = vmatprep.subr.mxu0 0.0
  %361 = vmatpush1.msra.mxu0 %v118
  %362 = vmatprep.subr.mxu0 0.0
  %363 = vmatpush1.msra.mxu0 %v119
  %364 = vmatprep.subr.mxu0 0.0
  %365 = vmatpush1.msra.mxu0 %v120
  %366 = vmatprep.subr.mxu0 0.0
  %367 = vmatpush1.msra.mxu0 %v121
  %368 = vmatprep.subr.mxu0 0.0
  %369 = vmatpush1.msra.mxu0 %v122
  %370 = vmatprep.subr.mxu0 0.0
  %371 = vmatpush1.msra.mxu0 %v123
  %372 = vmatprep.subr.mxu0 0.0
  %373 = vmatpush1.msra.mxu0 %v124
  %374 = vmatprep.subr.mxu0 0.0
  %375 = vmatpush1.msra.mxu0 %v125
  %376 = vmatprep.subr.mxu0 0.0
  %377 = vmatpush1.msra.mxu0 %v126
  %378 = vmatprep.subr.mxu0 0.0
  %379 = vmatpush1.msra.mxu0 %v127
  %380 = vmatprep.subr.mxu0 0.0
  %381 = vmatpush1.msra.mxu0 %v128
  %382 = vmatprep.subr.mxu0 0.0
  %383 = vmatpush1.msra.mxu0 %v129
  %384 = vmatprep.subr.mxu0 0.0
  %385 = vmatpush1.msra.mxu0 %v130
  %386 = vmatprep.subr.mxu0 0.0
  %387 = vmatpush1.msra.mxu0 %v131
  %388 = vmatprep.subr.mxu0 0.0
  %389 = vmatpush1.msra.mxu0 %v132
  %390 = vmatprep.subr.mxu0 0.0
  %391 = vmatpush1.msra.mxu0 %v133
  %392 = vmatprep.subr.mxu0 0.0
  %393 = vmatpush1.msra.mxu0 %v134
  %394 = vmatprep.subr.mxu0 0.0
  %395 = vmatpush1.msra.mxu0 %v135
  %396 = vmatprep.subr.mxu0 0.0
  %397 = vmatpush1.msra.mxu0 %v136
  %398 = vmatprep.subr.mxu0 0.0
  %399 = vmatpush1.msra.mxu0 %v137
  %400 = vmatprep.subr.mxu0 0.0
  %401 = vmatpush1.msra.mxu0 %v138
  %402 = vmatprep.subr.mxu0 0.0
  %403 = vmatpush1.msra.mxu0 %v139
  %404 = vmatprep.subr.mxu0 0.0
  %405 = vmatpush1.msra.mxu0 %v140
  %406 = vmatprep.subr.mxu0 0.0
  %407 = vmatpush1.msra.mxu0 %v141
  %408 = vmatprep.subr.mxu0 0.0
  %409 = vmatpush1.msra.mxu0 %v142
  %410 = vmatprep.subr.mxu0 0.0
  %411 = vmatpush1.msra.mxu0 %v143
  %412 = vmatprep.subr.mxu0 0.0
  %413 = vmatpush1.msra.mxu0 %v144
  %414 = vmatprep.subr.mxu0 0.0
  %415 = vmatpush1.msra.mxu0 %v145
  %416 = vmatprep.subr.mxu0 0.0
  %417 = vmatpush1.msra.mxu0 %v146
  %418 = vmatprep.subr.mxu0 0.0
  %419 = vmatpush1.msra.mxu0 %v147
  %420 = vmatprep.subr.mxu0 0.0
  %421 = vmatpush1.msra.mxu0 %v148
  %422 = vmatprep.subr.mxu0 0.0
  %423 = vmatpush1.msra.mxu0 %v149
  %424 = vmatprep.mubr.f32.mxu0 %v21
  %425 = vmatmul.mubr.f32.gmra.mrb[0].mxu0 %v20
  %v426 = vpop.f32.mrb[0].mxu0
  %v427 = vadd.f32 %v357, %v426
  %v428 = vpop.f32.mrb[0].mxu0
  %429 = vdwg.mxu0
  %vm430 = vcmp.ge.f32.partialorder %v427, 0.0
  %v431 = vmul.f32 %v427, 0.2
  %v432 = vsel %vm430, %v427, %v431
  %v433 = vld [vmem:[%s2] sm:$0xff]
  %v434 = vld [vmem:[%s2 + $0x8] sm:$0xff]
  %v435 = vld [vmem:[%s2 + $0x10] sm:$0xff]
  %v436 = vld [vmem:[%s2 + $0x18] sm:$0xff]
  %v437 = vld [vmem:[%s2 + $0x20] sm:$0xff]
  %v438 = vld [vmem:[%s2 + $0x28] sm:$0xff]
  %v439 = vld [vmem:[%s2 + $0x30] sm:$0xff]
  %v440 = vld [vmem:[%s2 + $0x38] sm:$0xff]
  %vm441 = vcmask 523264
  %v443 = vsel %vm441, %v432, 0
  %445 = vmatprep.subr.mxu0 0.0
  %446 = vmatpush1.msra.mxu0 %v433
  %447 = vmatprep.subr.mxu0 0.0
  %448 = vmatpush1.msra.mxu0 %v434
  %449 = vmatprep.subr.mxu0 0.0
  %450 = vmatpush1.msra.mxu0 %v435
  %451 = vmatprep.subr.mxu0 0.0
  %452 = vmatpush1.msra.mxu0 %v436
  %453 = vmatprep.subr.mxu0 0.0
  %454 = vmatpush1.msra.mxu0 %v437
  %455 = vmatprep.subr.mxu0 0.0
  %456 = vmatpush1.msra.mxu0 %v438
  %457 = vmatprep.subr.mxu0 0.0
  %458 = vmatpush1.msra.mxu0 %v439
  %459 = vmatprep.subr.mxu0 0.0
  %460 = vmatpush1.msra.mxu0 %v440
  %461 = vmatprep.subr.mxu0 0.0
  %462 = vmatpush1.msra.mxu0 0.0
  %463 = vmatprep.subr.mxu0 0.0
  %464 = vmatpush1.msra.mxu0 0.0
  %465 = vmatprep.subr.mxu0 0.0
  %466 = vmatpush1.msra.mxu0 0.0
  %467 = vmatprep.subr.mxu0 0.0
  %468 = vmatpush1.msra.mxu0 0.0
  %469 = vmatprep.subr.mxu0 0.0
  %470 = vmatpush1.msra.mxu0 0.0
  %471 = vmatprep.subr.mxu0 0.0
  %472 = vmatpush1.msra.mxu0 0.0
  %473 = vmatprep.subr.mxu0 0.0
  %474 = vmatpush1.msra.mxu0 0.0
  %475 = vmatprep.subr.mxu0 0.0
  %476 = vmatpush1.msra.mxu0 0.0
  %477 = vmatprep.subr.mxu0 0.0
  %478 = vmatpush1.msra.mxu0 0.0
  %479 = vmatprep.subr.mxu0 0.0
  %480 = vmatpush1.msra.mxu0 0.0
  %481 = vmatprep.subr.mxu0 0.0
  %482 = vmatpush1.msra.mxu0 0.0
  %483 = vmatprep.subr.mxu0 0.0
  %484 = vmatpush1.msra.mxu0 0.0
  %485 = vmatprep.subr.mxu0 0.0
  %486 = vmatpush1.msra.mxu0 0.0
  %487 = vmatprep.subr.mxu0 0.0
  %488 = vmatpush1.msra.mxu0 0.0
  %489 = vmatprep.subr.mxu0 0.0
  %490 = vmatpush1.msra.mxu0 0.0
  %491 = vmatprep.subr.mxu0 0.0
  %492 = vmatpush1.msra.mxu0 0.0
  %493 = vmatprep.subr.mxu0 0.0
  %494 = vmatpush1.msra.mxu0 0.0
  %495 = vmatprep.subr.mxu0 0.0
  %496 = vmatpush1.msra.mxu0 0.0
  %497 = vmatprep.subr.mxu0 0.0
  %498 = vmatpush1.msra.mxu0 0.0
  %499 = vmatprep.subr.mxu0 0.0
  %500 = vmatpush1.msra.mxu0 0.0
  %501 = vmatprep.subr.mxu0 0.0
  %502 = vmatpush1.msra.mxu0 0.0
  %503 = vmatprep.subr.mxu0 0.0
  %504 = vmatpush1.msra.mxu0 0.0
  %505 = vmatprep.subr.mxu0 0.0
  %506 = vmatpush1.msra.mxu0 0.0
  %507 = vmatprep.subr.mxu0 0.0
  %508 = vmatpush1.msra.mxu0 0.0
  %509 = vmatprep.mubr.f32.mxu0 0.0
  %510 = vmatmul.mubr.f32.gmra.mrb[0].mxu0 %v443
  %v511 = vpop.f32.mrb[0].mxu0
  %v512 = vadd.f32 0.0, %v511
  %v513 = vpop.f32.mrb[0].mxu0
  %514 = vdwg.mxu0
  %vm515 = vcmask 5120
  %516 = vst.msk [vmem:[%s3] sm:$0x3f] %vm515, %v512
  // Predicated region
  $region14: #{tpu_custom_call.1} parent=0 // pred_check
    _
  $region15: #{tpu_custom_call.1} parent=0 // pred_check_branch
    %518 = sbr.rel (0) target = $region17
  $region16: #{tpu_custom_call.1} parent=0 // pred_region
    _
  $region17: #{tpu_custom_call.1} parent=0 // pred_fallthru
    _
  // Predicated region
  $region18: #{tpu_custom_call.1} parent=0 // pred_check
    _
  $region19: #{tpu_custom_call.1} parent=0 // pred_check_branch
    %520 = sbr.rel (0) target = $region21
  $region20: #{tpu_custom_call.1} parent=0 // pred_region
    _
  $region21: #{tpu_custom_call.1} parent=0 // pred_fallthru
    _

</llo_original>
